<compile_context>
chip_gen: v6e
topology: v6e:2x2x1
jax: 0.10.0
libtpu: 0.0.40
codegen_flags: <defaults>
</compile_context>

<pallas_src>
import functools

import jax
import jax.numpy as jnp
from jax.experimental import pallas as pl
from jax.experimental.pallas import tpu as pltpu


def mlp_kernel(x_ref, w1_ref, b1_ref, w2_ref, b2_ref, o_ref):
    """out = relu(x @ w1 + b1) @ w2 + b2 on one (possibly lane-packed) batch tile."""
    h = jnp.dot(x_ref[...], w1_ref[...], preferred_element_type=jnp.float32)
    h = jnp.maximum(h + b1_ref[...], 0.0)               # bias + ReLU: free VPU filler
    out = jnp.dot(h, w2_ref[...], preferred_element_type=jnp.float32)
    o_ref[...] = (out + b2_ref[...]).astype(o_ref.dtype)


def _round_up(x, m):
    return ((x + m - 1) // m) * m


def _vmem_tile_bytes(rows, cols, itemsize=4):
    """Real VMEM footprint of a (rows, cols) tile: sublane/lane padded to (8, 128)."""
    return _round_up(max(rows, 1), 8) * _round_up(max(cols, 1), 128) * itemsize


@functools.lru_cache(maxsize=None)
def _vmem_capacity_bytes():
    """Physical VMEM of the attached TPU; conservative fallback if unknown."""
    try:
        cap = getattr(pltpu.get_tpu_info(), "vmem_capacity_bytes", None)
        if cap:
            return int(cap)
    except Exception:
        pass
    return 64 * 1024 * 1024          # assume v7x (the smallest VMEM generation)


def _pick_pack_factor(batch, d_in):
    """How many batch rows to pack into the 128-lane axis (1 = no packing)."""
    p = max(1, min(16, 128 // max(d_in, 1)))
    # Packing requires the wrapper reshape (B, D_in) -> (B/P, P*D_in) to be a
    # free bitcast, i.e. B % P == 0; otherwise use the unpacked layout (ragged
    # last blocks still mean no pad copy is ever made).
    return p if (p > 1 and batch % p == 0) else 1


@functools.partial(jax.jit, static_argnames=("max_batch_tile",))
def mlp_forward(x, w1, b1, w2, b2, *, max_batch_tile=8192):
    """Fused MLP forward: relu(x @ w1 + b1) @ w2 + b2.

    x : (B, D_in) float32
    w1: (D_in, H) float32, b1: (1, H) float32
    w2: (H, D_out) float32, b2: (1, D_out) float32
    """
    B, D_in = x.shape
    H = w1.shape[1]
    D_out = w2.shape[1]
    itemsize = jnp.dtype(x.dtype).itemsize

    # ---- lane packing (block-diagonal weight lift) --------------------------
    P = _pick_pack_factor(B, D_in)
    Bp = B // P                                   # packed batch rows
    Pin, Phid, Pout = P * D_in, P * H, P * D_out

    xp = x.reshape(Bp, Pin)                       # free bitcast (row-major)
    eye = jnp.eye(P, dtype=w1.dtype)
    w1p = jnp.kron(eye, w1)                       # (Pin, Phid) block-diagonal
    w2p = jnp.kron(eye, w2)                       # (Phid, Pout) block-diagonal
    b1p = jnp.tile(b1, (1, P))                    # (1, Phid)
    b2p = jnp.tile(b2, (1, P))                    # (1, Pout)

    # ---- generation-aware VMEM budget & batch tile selection ----------------
    capacity = _vmem_capacity_bytes()             # 128 MiB v5e/v6e, 64 MiB v7x
    vmem_limit = (capacity * 3) // 4              # leave headroom for Mosaic scratch

    # Resident weights/biases; x2 because Pallas double-buffers every input by
    # default even when its block index never changes.
    weight_bytes = 2 * (_vmem_tile_bytes(Pin, Phid, itemsize)
                        + _vmem_tile_bytes(1, Phid, itemsize)
                        + _vmem_tile_bytes(Phid, Pout, itemsize)
                        + _vmem_tile_bytes(1, Pout, itemsize))
    # Per packed row: double-buffered x / out streaming tiles plus one fused
    # hidden intermediate, all lane-padded to 128.
    per_row_bytes = itemsize * (2 * _round_up(Pin, 128)
                                + 2 * _round_up(Pout, 128)
                                + _round_up(Phid, 128))
    budget = max(vmem_limit - weight_bytes - (4 << 20), 8 * per_row_bytes)

    tbp_vmem = max(8, (budget // per_row_bytes) // 8 * 8)
    tbp_user = max(8, _round_up(max(max_batch_tile // P, 1), 8))
    # Keep >=4 grid steps for big batches (v7x has 2 TensorCores; the pipeline
    # also needs multiple steps), but never shrink a step below ~2048 rows of
    # work — per-grid-step overhead is ~0.35 us.
    tbp_split = max(_round_up(pl.cdiv(Bp, 4), 8), _round_up(max(2048 // P, 8), 8))

    TBp = max(8, min(tbp_vmem, tbp_user, tbp_split))
    if TBp >= Bp:
        TBp = Bp                                  # single full-extent block
    num_tiles = pl.cdiv(Bp, TBp)                  # last block may be ragged

    out = pl.pallas_call(
        mlp_kernel,
        out_shape=jax.ShapeDtypeStruct((Bp, Pout), x.dtype),
        grid=(num_tiles,),
        in_specs=[
            pl.BlockSpec((TBp, Pin), lambda i: (i, 0)),    # x streams per tile
            pl.BlockSpec((Pin, Phid), lambda i: (0, 0)),   # weights stay VMEM-resident
            pl.BlockSpec((1, Phid), lambda i: (0, 0)),
            pl.BlockSpec((Phid, Pout), lambda i: (0, 0)),
            pl.BlockSpec((1, Pout), lambda i: (0, 0)),
        ],
        out_specs=pl.BlockSpec((TBp, Pout), lambda i: (i, 0)),
        compiler_params=pltpu.CompilerParams(
            dimension_semantics=("parallel",),    # batch axis; megacore-shardable
            vmem_limit_bytes=vmem_limit,
        ),
    )(xp, w1p, b1p, w2p, b2p)

    # Free bitcast back to the logical (B, num_classes) logits.
    return out.reshape(B, D_out)


if __name__ == "__main__":
    # Shapes implied by the module: x is a (batch, input_dim) tabular feature
    # matrix (post StandardScaler), output is (batch, num_classes) logits.
    input_dim = 16
    hidden_dim = 32
    output_dim = 4

    key = jax.random.PRNGKey(0)
    kx1, kw1, kb1, kw2, kb2, kx2, kx3 = jax.random.split(key, 7)

    # nn.Linear-style uniform(-1/sqrt(fan_in), +1/sqrt(fan_in)) init.
    bound1 = 1.0 / jnp.sqrt(jnp.float32(input_dim))
    w1 = jax.random.uniform(kw1, (input_dim, hidden_dim), jnp.float32, -bound1, bound1)
    b1 = jax.random.uniform(kb1, (1, hidden_dim), jnp.float32, -bound1, bound1)
    bound2 = 1.0 / jnp.sqrt(jnp.float32(hidden_dim))
    w2 = jax.random.uniform(kw2, (hidden_dim, output_dim), jnp.float32, -bound2, bound2)
    b2 = jax.random.uniform(kb2, (1, output_dim), jnp.float32, -bound2, bound2)

    def ref(xv):
        return jnp.maximum(xv @ w1 + b1, 0.0) @ w2 + b2

    # Case 1: small batch, lane-packed path, single grid step.
    x1 = jax.random.normal(kx1, (8, input_dim), dtype=jnp.float32)
    o1 = jax.block_until_ready(mlp_forward(x1, w1, b1, w2, b2))
    assert o1.shape == (8, output_dim)
    assert jnp.allclose(o1, ref(x1), atol=1e-5, rtol=1e-5)

    # Case 2: batch divisible by the pack factor but not by the forced tile ->
    # lane-packed path, 4 grid steps with a ragged last block (no pad copies).
    x2 = jax.random.normal(kx2, (200, input_dim), dtype=jnp.float32)
    o2 = jax.block_until_ready(mlp_forward(x2, w1, b1, w2, b2, max_batch_tile=64))
    assert o2.shape == (200, output_dim)
    assert jnp.allclose(o2, ref(x2), atol=1e-5, rtol=1e-5)

    # Case 3: batch not divisible by the pack factor -> unpacked fallback,
    # ragged last block handled by Pallas (still no pad copy).
    x3 = jax.random.normal(kx3, (203, input_dim), dtype=jnp.float32)
    o3 = jax.block_until_ready(mlp_forward(x3, w1, b1, w2, b2, max_batch_tile=64))
    assert o3.shape == (203, output_dim)
    assert jnp.allclose(o3, ref(x3), atol=1e-5, rtol=1e-5)

    print("KERNEL_OK")
</pallas_src>

<mosaic_0001>
module attributes {stable_mosaic.version = 11 : i64} {
  func.func @mlp_kernel(%arg0: i32, %arg1: memref<1x128xf32, #tpu.memory_space<vmem>>, %arg2: memref<128x256xf32, #tpu.memory_space<vmem>>, %arg3: memref<1x256xf32, #tpu.memory_space<vmem>>, %arg4: memref<256x32xf32, #tpu.memory_space<vmem>>, %arg5: memref<1x32xf32, #tpu.memory_space<vmem>>, %arg6: memref<1x32xf32, #tpu.memory_space<vmem>>) attributes {dimension_semantics = [#tpu.dimension_semantics<parallel>], iteration_bounds = array<i64: 1>, scalar_prefetch = 0 : i64, scratch_operands = 0 : i64, tpu.core_type = #tpu.core_type<tc>, window_params = [{transform_indices = @transform_0, window_bounds = array<i64: 1, 128>}, {pipeline_mode = #tpu.pipeline_mode<synchronous>, transform_indices = @transform_1, window_bounds = array<i64: 128, 256>}, {pipeline_mode = #tpu.pipeline_mode<synchronous>, transform_indices = @transform_2, window_bounds = array<i64: 1, 256>}, {pipeline_mode = #tpu.pipeline_mode<synchronous>, transform_indices = @transform_3, window_bounds = array<i64: 256, 32>}, {pipeline_mode = #tpu.pipeline_mode<synchronous>, transform_indices = @transform_4, window_bounds = array<i64: 1, 32>}, {transform_indices = @transform_5, window_bounds = array<i64: 1, 32>}]} {
    %c0 = arith.constant 0 : index
    %c0_0 = arith.constant 0 : index
    %0 = vector.load %arg1[%c0, %c0_0] : memref<1x128xf32, #tpu.memory_space<vmem>>, vector<1x128xf32>
    %c0_1 = arith.constant 0 : index
    %c0_2 = arith.constant 0 : index
    %1 = vector.load %arg2[%c0_1, %c0_2] : memref<128x256xf32, #tpu.memory_space<vmem>>, vector<128x256xf32>
    %cst = arith.constant dense<0.000000e+00> : vector<1x256xf32>
    %2 = tpu.matmul %0, %1, %cst {dimension_numbers = #tpu.dot_dimension_numbers<[1], [0], [0], [1], [0, 0, 1, 1], [], []>} : vector<1x128xf32>, vector<128x256xf32>, vector<1x256xf32> -> vector<1x256xf32>
    %c0_3 = arith.constant 0 : index
    %c0_4 = arith.constant 0 : index
    %3 = vector.load %arg3[%c0_3, %c0_4] : memref<1x256xf32, #tpu.memory_space<vmem>>, vector<1x256xf32>
    %4 = arith.addf %2, %3 : vector<1x256xf32>
    %cst_5 = arith.constant 0.000000e+00 : f32
    %5 = vector.broadcast %cst_5 : f32 to vector<1x256xf32>
    %6 = arith.maximumf %4, %5 : vector<1x256xf32>
    %c0_6 = arith.constant 0 : index
    %c0_7 = arith.constant 0 : index
    %7 = vector.load %arg4[%c0_6, %c0_7] : memref<256x32xf32, #tpu.memory_space<vmem>>, vector<256x32xf32>
    %cst_8 = arith.constant dense<0.000000e+00> : vector<1x32xf32>
    %8 = tpu.matmul %6, %7, %cst_8 {dimension_numbers = #tpu.dot_dimension_numbers<[1], [0], [0], [1], [0, 0, 1, 1], [], []>} : vector<1x256xf32>, vector<256x32xf32>, vector<1x32xf32> -> vector<1x32xf32>
    %c0_9 = arith.constant 0 : index
    %c0_10 = arith.constant 0 : index
    %9 = vector.load %arg5[%c0_9, %c0_10] : memref<1x32xf32, #tpu.memory_space<vmem>>, vector<1x32xf32>
    %10 = arith.addf %8, %9 : vector<1x32xf32>
    %c0_11 = arith.constant 0 : index
    %c0_12 = arith.constant 0 : index
    %11 = vector.load %arg6[%c0_11, %c0_12] : memref<1x32xf32, #tpu.memory_space<vmem>>, vector<1x32xf32>
    tpu.vector_store %arg6[%c0_11, %c0_12], %10 {strides = array<i32>} : memref<1x32xf32, #tpu.memory_space<vmem>>, vector<1x32xf32>,
    return
  }
  func.func @transform_0(%arg0: i32) -> (i32, i32) {
    %c0_i32 = arith.constant 0 : i32
    %c0_i32_0 = arith.constant 0 : i32
    return %arg0, %c0_i32 : i32, i32
  }
  func.func @transform_1(%arg0: i32) -> (i32, i32) {
    %c0_i32 = arith.constant 0 : i32
    %c0_i32_0 = arith.constant 0 : i32
    %c0_i32_1 = arith.constant 0 : i32
    return %c0_i32, %c0_i32_0 : i32, i32
  }
  func.func @transform_2(%arg0: i32) -> (i32, i32) {
    %c0_i32 = arith.constant 0 : i32
    %c0_i32_0 = arith.constant 0 : i32
    %c0_i32_1 = arith.constant 0 : i32
    return %c0_i32, %c0_i32_0 : i32, i32
  }
  func.func @transform_3(%arg0: i32) -> (i32, i32) {
    %c0_i32 = arith.constant 0 : i32
    %c0_i32_0 = arith.constant 0 : i32
    %c0_i32_1 = arith.constant 0 : i32
    return %c0_i32, %c0_i32_0 : i32, i32
  }
  func.func @transform_4(%arg0: i32) -> (i32, i32) {
    %c0_i32 = arith.constant 0 : i32
    %c0_i32_0 = arith.constant 0 : i32
    %c0_i32_1 = arith.constant 0 : i32
    return %c0_i32, %c0_i32_0 : i32, i32
  }
  func.func @transform_5(%arg0: i32) -> (i32, i32) {
    %c0_i32 = arith.constant 0 : i32
    %c0_i32_0 = arith.constant 0 : i32
    return %arg0, %c0_i32 : i32, i32
  }
}

</mosaic_0001>

<llo_original>
// kernel: mlp_forward.1
$region0: #{mlp_forward.1}
  #allocation0 [shape = 'u32[]', space=smem, size = 0x4, offset = 0x4, fixed_abs, tag = 'smem constant byte address 0x4 - core index']
  #allocation1 [shape = 'u32[144,128]{1,0:T(1,128)}', space=vmem, size = 0x12000, scoped, tag = 'internal scratch']
  %s0 = inlined_call_operand.vmem [shape: f32[1,128], index: 0, kind: input, shape index: {}]
  %s1 = inlined_call_operand.vmem [shape: f32[128,256], index: 1, kind: input, shape index: {}]
  %s2 = inlined_call_operand.vmem [shape: f32[1,256], index: 2, kind: input, shape index: {}]
  %s3 = inlined_call_operand.vmem [shape: f32[256,32], index: 3, kind: input, shape index: {}]
  %s4 = inlined_call_operand.vmem [shape: f32[1,32], index: 4, kind: input, shape index: {}]
  %s5 = inlined_call_operand.vmem [shape: f32[1,32], index: 5, kind: output, shape index: {}]
  %s6 = sld [smem:[#allocation0]]
  $region30: #{mlp_forward.1} parent=0
    _
  %s8 = ssub.s32 1, %s6
  %s9 = scalar_select 0, %s8, %s6
  // Predicated region
  $region2: #{mlp_forward.1} parent=0 // pred_check
    _
  $region3: #{mlp_forward.1} parent=0 // pred_check_branch
    %11 = sbr.rel (0) target = $region5
  $region4: #{mlp_forward.1} parent=0 // pred_region
    _
  $region5: #{mlp_forward.1} parent=0 // pred_fallthru
    _
  // Predicated region
  $region6: #{mlp_forward.1} parent=0 // pred_check
    _
  $region7: #{mlp_forward.1} parent=0 // pred_check_branch
    %13 = sbr.rel (0) target = $region9
  $region8: #{mlp_forward.1} parent=0 // pred_region
    _
  $region9: #{mlp_forward.1} parent=0 // pred_fallthru
    _
  // Predicated region
  $region10: #{mlp_forward.1} parent=0 // pred_check
    _
  $region11: #{mlp_forward.1} parent=0 // pred_check_branch
    %15 = sbr.rel (0) target = $region13
  $region12: #{mlp_forward.1} parent=0 // pred_region
    _
  $region13: #{mlp_forward.1} parent=0 // pred_fallthru
    _
  // Predicated region
  $region14: #{mlp_forward.1} parent=0 // pred_check
    _
  $region15: #{mlp_forward.1} parent=0 // pred_check_branch
    %17 = sbr.rel (0) target = $region17
  $region16: #{mlp_forward.1} parent=0 // pred_region
    _
  $region17: #{mlp_forward.1} parent=0 // pred_fallthru
    _
  // Predicated region
  $region18: #{mlp_forward.1} parent=0 // pred_check
    _
  $region19: #{mlp_forward.1} parent=0 // pred_check_branch
    %19 = sbr.rel (0) target = $region21
  $region20: #{mlp_forward.1} parent=0 // pred_region
    _
  $region21: #{mlp_forward.1} parent=0 // pred_fallthru
    _
  %v20 = vld [vmem:[%s0] sm:$0x1]
  %v21 = vld [vmem:[%s1] sm:$0xff]
  %v22 = vld [vmem:[%s1 + $0x8] sm:$0xff]
  %v23 = vld [vmem:[%s1 + $0x10] sm:$0xff]
  %v24 = vld [vmem:[%s1 + $0x18] sm:$0xff]
  %v25 = vld [vmem:[%s1 + $0x20] sm:$0xff]
  %v26 = vld [vmem:[%s1 + $0x28] sm:$0xff]
  %v27 = vld [vmem:[%s1 + $0x30] sm:$0xff]
  %v28 = vld [vmem:[%s1 + $0x38] sm:$0xff]
  %v29 = vld [vmem:[%s1 + $0x40] sm:$0xff]
  %v30 = vld [vmem:[%s1 + $0x48] sm:$0xff]
  %v31 = vld [vmem:[%s1 + $0x50] sm:$0xff]
  %v32 = vld [vmem:[%s1 + $0x58] sm:$0xff]
  %v33 = vld [vmem:[%s1 + $0x60] sm:$0xff]
  %v34 = vld [vmem:[%s1 + $0x68] sm:$0xff]
  %v35 = vld [vmem:[%s1 + $0x70] sm:$0xff]
  %v36 = vld [vmem:[%s1 + $0x78] sm:$0xff]
  %v37 = vld [vmem:[%s1 + $0x80] sm:$0xff]
  %v38 = vld [vmem:[%s1 + $0x88] sm:$0xff]
  %v39 = vld [vmem:[%s1 + $0x90] sm:$0xff]
  %v40 = vld [vmem:[%s1 + $0x98] sm:$0xff]
  %v41 = vld [vmem:[%s1 + $0xa0] sm:$0xff]
  %v42 = vld [vmem:[%s1 + $0xa8] sm:$0xff]
  %v43 = vld [vmem:[%s1 + $0xb0] sm:$0xff]
  %v44 = vld [vmem:[%s1 + $0xb8] sm:$0xff]
  %v45 = vld [vmem:[%s1 + $0xc0] sm:$0xff]
  %v46 = vld [vmem:[%s1 + $0xc8] sm:$0xff]
  %v47 = vld [vmem:[%s1 + $0xd0] sm:$0xff]
  %v48 = vld [vmem:[%s1 + $0xd8] sm:$0xff]
  %v49 = vld [vmem:[%s1 + $0xe0] sm:$0xff]
  %v50 = vld [vmem:[%s1 + $0xe8] sm:$0xff]
  %v51 = vld [vmem:[%s1 + $0xf0] sm:$0xff]
  %v52 = vld [vmem:[%s1 + $0xf8] sm:$0xff]
  %v53 = vld [vmem:[%s2] sm:$0x3]
  %v55 = vlaneseq
  %v56 = vshrl.u32 %v55, 7
  %v57 = vsub.s32 0, %v56
  %v58 = vrot.slane %v53, %v57
  %v59 = vlaneseq
  %v60 = vshrl.u32 %v59, 7
  %v61 = vsub.s32 1, %v60
  %v62 = vrot.slane %v53, %v61
  %65 = vmatprep.subr.mxu0 %v52
  %66 = vmatpush1.msra.mxu0 %v51
  %67 = vmatprep.subr.mxu0 %v50
  %68 = vmatpush1.msra.mxu0 %v49
  %69 = vmatprep.subr.mxu0 %v48
  %70 = vmatpush1.msra.mxu0 %v47
  %71 = vmatprep.subr.mxu0 %v46
  %72 = vmatpush1.msra.mxu0 %v45
  %73 = vmatprep.subr.mxu0 %v44
  %74 = vmatpush1.msra.mxu0 %v43
  %75 = vmatprep.subr.mxu0 %v42
  %76 = vmatpush1.msra.mxu0 %v41
  %77 = vmatprep.subr.mxu0 %v40
  %78 = vmatpush1.msra.mxu0 %v39
  %79 = vmatprep.subr.mxu0 %v38
  %80 = vmatpush1.msra.mxu0 %v37
  %81 = vmatprep.subr.mxu0 %v36
  %82 = vmatpush1.msra.mxu0 %v35
  %83 = vmatprep.subr.mxu0 %v34
  %84 = vmatpush1.msra.mxu0 %v33
  %85 = vmatprep.subr.mxu0 %v32
  %86 = vmatpush1.msra.mxu0 %v31
  %87 = vmatprep.subr.mxu0 %v30
  %88 = vmatpush1.msra.mxu0 %v29
  %89 = vmatprep.subr.mxu0 %v28
  %90 = vmatpush1.msra.mxu0 %v27
  %91 = vmatprep.subr.mxu0 %v26
  %92 = vmatpush1.msra.mxu0 %v25
  %93 = vmatprep.subr.mxu0 %v24
  %94 = vmatpush1.msra.mxu0 %v23
  %95 = vmatprep.subr.mxu0 %v22
  %96 = vmatpush1.msra.mxu0 %v21
  %97 = vmatprep.subr.mxu0 0.0
  %98 = vmatpush2.msra.mxu0 0.0
  %99 = vmatprep.subr.mxu0 0.0
  %100 = vmatpush2.msra.mxu0 0.0
  %101 = vmatprep.subr.mxu0 0.0
  %102 = vmatpush2.msra.mxu0 0.0
  %103 = vmatprep.subr.mxu0 0.0
  %104 = vmatpush2.msra.mxu0 0.0
  %105 = vmatprep.subr.mxu0 0.0
  %106 = vmatpush2.msra.mxu0 0.0
  %107 = vmatprep.subr.mxu0 0.0
  %108 = vmatpush2.msra.mxu0 0.0
  %109 = vmatprep.subr.mxu0 0.0
  %110 = vmatpush2.msra.mxu0 0.0
  %111 = vmatprep.subr.mxu0 0.0
  %112 = vmatpush2.msra.mxu0 0.0
  %113 = vmatprep.subr.mxu0 0.0
  %114 = vmatpush2.msra.mxu0 0.0
  %115 = vmatprep.subr.mxu0 0.0
  %116 = vmatpush2.msra.mxu0 0.0
  %117 = vmatprep.subr.mxu0 0.0
  %118 = vmatpush2.msra.mxu0 0.0
  %119 = vmatprep.subr.mxu0 0.0
  %120 = vmatpush2.msra.mxu0 0.0
  %121 = vmatprep.subr.mxu0 0.0
  %122 = vmatpush2.msra.mxu0 0.0
  %123 = vmatprep.subr.mxu0 0.0
  %124 = vmatpush2.msra.mxu0 0.0
  %125 = vmatprep.subr.mxu0 0.0
  %126 = vmatpush2.msra.mxu0 0.0
  %127 = vmatprep.subr.mxu0 0.0
  %128 = vmatpush2.msra.mxu0 0.0
  %129 = vmatprep.mubr.f32.mxu0 0.0
  %130 = vmatmul.mubr.f32.gmra.mxu0 %v20
  %v131 = vpop.f32.mrf.mxu0
  %v132 = vadd.f32 %v58, %v131
  %v133 = vpop.f32.mrf.mxu0
  %v134 = vadd.f32 %v62, %v133
  %135 = vdwg.mxu0
  %v136 = vmax.f32 %v132, 0.0
  %v137 = vmax.f32 %v134, 0.0
  %v138 = vld [vmem:[%s3] sm:$0xff]
  %v139 = vld [vmem:[%s3 + $0x8] sm:$0xff]
  %v140 = vld [vmem:[%s3 + $0x10] sm:$0xff]
  %v141 = vld [vmem:[%s3 + $0x18] sm:$0xff]
  %v142 = vld [vmem:[%s3 + $0x20] sm:$0xff]
  %v143 = vld [vmem:[%s3 + $0x28] sm:$0xff]
  %v144 = vld [vmem:[%s3 + $0x30] sm:$0xff]
  %v145 = vld [vmem:[%s3 + $0x38] sm:$0xff]
  %v146 = vld [vmem:[%s3 + $0x40] sm:$0xff]
  %v147 = vld [vmem:[%s3 + $0x48] sm:$0xff]
  %v148 = vld [vmem:[%s3 + $0x50] sm:$0xff]
  %v149 = vld [vmem:[%s3 + $0x58] sm:$0xff]
  %v150 = vld [vmem:[%s3 + $0x60] sm:$0xff]
  %v151 = vld [vmem:[%s3 + $0x68] sm:$0xff]
  %v152 = vld [vmem:[%s3 + $0x70] sm:$0xff]
  %v153 = vld [vmem:[%s3 + $0x78] sm:$0xff]
  %v154 = vld [vmem:[%s3 + $0x80] sm:$0xff]
  %v155 = vld [vmem:[%s3 + $0x88] sm:$0xff]
  %v156 = vld [vmem:[%s3 + $0x90] sm:$0xff]
  %v157 = vld [vmem:[%s3 + $0x98] sm:$0xff]
  %v158 = vld [vmem:[%s3 + $0xa0] sm:$0xff]
  %v159 = vld [vmem:[%s3 + $0xa8] sm:$0xff]
  %v160 = vld [vmem:[%s3 + $0xb0] sm:$0xff]
  %v161 = vld [vmem:[%s3 + $0xb8] sm:$0xff]
  %v162 = vld [vmem:[%s3 + $0xc0] sm:$0xff]
  %v163 = vld [vmem:[%s3 + $0xc8] sm:$0xff]
  %v164 = vld [vmem:[%s3 + $0xd0] sm:$0xff]
  %v165 = vld [vmem:[%s3 + $0xd8] sm:$0xff]
  %v166 = vld [vmem:[%s3 + $0xe0] sm:$0xff]
  %v167 = vld [vmem:[%s3 + $0xe8] sm:$0xff]
  %v168 = vld [vmem:[%s3 + $0xf0] sm:$0xff]
  %v169 = vld [vmem:[%s3 + $0xf8] sm:$0xff]
  %v170 = vld [vmem:[%s4] sm:$0x1]
  %171 = vmatprep.subr.mxu0 0.0
  %172 = vmatpush1.msra.mxu0 %v153
  %173 = vmatprep.subr.mxu0 0.0
  %174 = vmatpush1.msra.mxu0 %v152
  %175 = vmatprep.subr.mxu0 0.0
  %176 = vmatpush1.msra.mxu0 %v151
  %177 = vmatprep.subr.mxu0 0.0
  %178 = vmatpush1.msra.mxu0 %v150
  %179 = vmatprep.subr.mxu0 0.0
  %180 = vmatpush1.msra.mxu0 %v149
  %181 = vmatprep.subr.mxu0 0.0
  %182 = vmatpush1.msra.mxu0 %v148
  %183 = vmatprep.subr.mxu0 0.0
  %184 = vmatpush1.msra.mxu0 %v147
  %185 = vmatprep.subr.mxu0 0.0
  %186 = vmatpush1.msra.mxu0 %v146
  %187 = vmatprep.subr.mxu0 0.0
  %188 = vmatpush1.msra.mxu0 %v145
  %189 = vmatprep.subr.mxu0 0.0
  %190 = vmatpush1.msra.mxu0 %v144
  %191 = vmatprep.subr.mxu0 0.0
  %192 = vmatpush1.msra.mxu0 %v143
  %193 = vmatprep.subr.mxu0 0.0
  %194 = vmatpush1.msra.mxu0 %v142
  %195 = vmatprep.subr.mxu0 0.0
  %196 = vmatpush1.msra.mxu0 %v141
  %197 = vmatprep.subr.mxu0 0.0
  %198 = vmatpush1.msra.mxu0 %v140
  %199 = vmatprep.subr.mxu0 0.0
  %200 = vmatpush1.msra.mxu0 %v139
  %201 = vmatprep.subr.mxu0 0.0
  %202 = vmatpush1.msra.mxu0 %v138
  %203 = vmatprep.subr.mxu0 0.0
  %204 = vmatpush2.msra.mxu0 %v169
  %205 = vmatprep.subr.mxu0 0.0
  %206 = vmatpush2.msra.mxu0 %v168
  %207 = vmatprep.subr.mxu0 0.0
  %208 = vmatpush2.msra.mxu0 %v167
  %209 = vmatprep.subr.mxu0 0.0
  %210 = vmatpush2.msra.mxu0 %v166
  %211 = vmatprep.subr.mxu0 0.0
  %212 = vmatpush2.msra.mxu0 %v165
  %213 = vmatprep.subr.mxu0 0.0
  %214 = vmatpush2.msra.mxu0 %v164
  %215 = vmatprep.subr.mxu0 0.0
  %216 = vmatpush2.msra.mxu0 %v163
  %217 = vmatprep.subr.mxu0 0.0
  %218 = vmatpush2.msra.mxu0 %v162
  %219 = vmatprep.subr.mxu0 0.0
  %220 = vmatpush2.msra.mxu0 %v161
  %221 = vmatprep.subr.mxu0 0.0
  %222 = vmatpush2.msra.mxu0 %v160
  %223 = vmatprep.subr.mxu0 0.0
  %224 = vmatpush2.msra.mxu0 %v159
  %225 = vmatprep.subr.mxu0 0.0
  %226 = vmatpush2.msra.mxu0 %v158
  %227 = vmatprep.subr.mxu0 0.0
  %228 = vmatpush2.msra.mxu0 %v157
  %229 = vmatprep.subr.mxu0 0.0
  %230 = vmatpush2.msra.mxu0 %v156
  %231 = vmatprep.subr.mxu0 0.0
  %232 = vmatpush2.msra.mxu0 %v155
  %233 = vmatprep.subr.mxu0 0.0
  %234 = vmatpush2.msra.mxu0 %v154
  %235 = vmatprep.mubr.f32.mxu0 %v137
  %236 = vmatmul.mubr.f32.gmra.mxu0 %v136
  %v237 = vpop.f32.mrf.mxu0
  %v238 = vadd.f32 %v170, %v237
  %v239 = vpop.f32.mrf.mxu0
  %240 = vdwg.mxu0
  %vm241 = vcmask 253952
  %242 = vst.msk [vmem:[%s5] sm:$0x1] %vm241, %v238
  // Predicated region
  $region22: #{mlp_forward.1} parent=0 // pred_check
    _
  $region23: #{mlp_forward.1} parent=0 // pred_check_branch
    %244 = sbr.rel (0) target = $region25
  $region24: #{mlp_forward.1} parent=0 // pred_region
    _
  $region25: #{mlp_forward.1} parent=0 // pred_fallthru
    _
  // Predicated region
  $region26: #{mlp_forward.1} parent=0 // pred_check
    _
  $region27: #{mlp_forward.1} parent=0 // pred_check_branch
    %246 = sbr.rel (0) target = $region29
  $region28: #{mlp_forward.1} parent=0 // pred_region
    _
  $region29: #{mlp_forward.1} parent=0 // pred_fallthru
    _

</llo_original>
